<compile_context>
chip_gen: v7x
topology: tpu7x:2x2x1
jax: 0.10.0
libtpu: 0.0.40
codegen_flags: <defaults>
</compile_context>

<pallas_src>
import jax
import jax.numpy as jnp
import numpy as np
from jax.experimental import pallas as pl
from jax.experimental.pallas import tpu as pltpu

EPS = 1e-5  # nn.BatchNorm1d default eps


def _fine_tune_kernel(x_ref, w1_ref, b1_ref, g1_ref, be1_ref,
                      w2_ref, b2_ref, g2_ref, be2_ref, wlin_ref, o_ref):
    Xt = x_ref[...]                                   # (16*Cin, N*T2), lane-dense
    N, Cout = o_ref.shape
    cols = Xt.shape[1]                                # N*T2
    T2 = cols // N
    mid4 = w1_ref.shape[0]                            # 4*mid
    mid = mid4 // 4

    # --- Conv1d(Cin -> mid, k=4, s=4): block-diagonal matmul -> (4*mid, N*T2)
    y1 = jnp.dot(w1_ref[...], Xt, preferred_element_type=jnp.float32) + b1_ref[...]

    # --- BatchNorm1d(mid), training-mode batch stats, then ReLU.
    # Rows j*mid+m (j=0..3) all belong to channel m; regroup per-row lane sums
    # with cheap sublane slices (no MXU matmuls, no G/GT operands).
    cnt1 = jnp.float32(4 * cols)                      # == N * T1

    def group4(v):                                    # (4*mid, 1) -> (mid, 1)
        return v[0:mid] + v[mid:2 * mid] + v[2 * mid:3 * mid] + v[3 * mid:4 * mid]

    mean1 = group4(jnp.sum(y1, axis=1, keepdims=True)) / cnt1          # (mid, 1)
    mean1c = jnp.concatenate([mean1] * 4, axis=0)                      # (4*mid, 1)
    d1 = y1 - mean1c
    var1 = group4(jnp.sum(d1 * d1, axis=1, keepdims=True)) / cnt1      # centered, biased
    scale1 = g1_ref[...] * jax.lax.rsqrt(var1 + EPS)                   # (mid, 1)
    scale1c = jnp.concatenate([scale1] * 4, axis=0)
    beta1c = jnp.concatenate([be1_ref[...]] * 4, axis=0)
    y1 = jnp.maximum(d1 * scale1c + beta1c, 0.0)

    # --- Conv1d(mid -> out, k=4, s=4) -> (Cout, N*T2), then ReLU (lane-dense tail)
    z = jnp.maximum(jnp.dot(w2_ref[...], y1, preferred_element_type=jnp.float32)
                    + b2_ref[...], 0.0)

    # --- BatchNorm1d(out): batch stats over the N*T2 lane axis, centered variance
    cnt2 = jnp.float32(cols)
    mean2 = jnp.sum(z, axis=1, keepdims=True) / cnt2                   # (Cout, 1)
    d2 = z - mean2
    var2 = jnp.sum(d2 * d2, axis=1, keepdims=True) / cnt2
    zbn = d2 * (g2_ref[...] * jax.lax.rsqrt(var2 + EPS)) + be2_ref[...]

    # --- MaxPool1d(64) over the T2(==64) axis, vectorized (no per-batch unroll),
    #     then Linear(1, 1, bias=False) as a scalar multiply.
    mp = jnp.max(zbn.T.reshape(N, T2, Cout), axis=1)                   # (N, Cout)
    o_ref[...] = mp * wlin_ref[0, 0]


def fine_tune_sbp_forward(x, params):
    """x: (N, C_in, L) float32. Returns (N, C_out, 1) like the PyTorch module."""
    w1, b1, gamma1, beta1, w2, b2, gamma2, beta2, wlin = params
    N, Cin, L = x.shape
    mid = w1.shape[0]
    Cout = w2.shape[0]
    T1 = L // 4
    T2 = T1 // 4
    assert T2 == 64, "architecture requires L//16 == 64 (MaxPool1d(64) then Linear(1))"

    # ---- glue: pure layout work (reshape / transpose / weight packing) ----
    # Activations, transposed so the long N*T2 axis lands on lanes in-kernel.
    Xt = (x.reshape(N, Cin, T2, 16).transpose(1, 3, 0, 2)
           .reshape(Cin * 16, N * T2).astype(jnp.float32))
    # Block-diagonal conv1 weight built with a single einsum (no .at[].set loop):
    #   W1bdT[j*mid + m, c*16 + l*4 + k] = w1[m, c, k] * (j == l)
    eye4 = jnp.eye(4, dtype=jnp.float32)
    W1bdT = (jnp.einsum('mck,jl->jmclk', w1.astype(jnp.float32), eye4)
               .reshape(4 * mid, Cin * 16))
    b1c = jnp.tile(b1, 4).reshape(4 * mid, 1)
    W2T = w2.transpose(0, 2, 1).reshape(Cout, 4 * mid)     # [o, j*mid + m]
    b2c = b2.reshape(Cout, 1)

    out = pl.pallas_call(
        _fine_tune_kernel,
        out_shape=jax.ShapeDtypeStruct((N, Cout), jnp.float32),
        in_specs=[pl.BlockSpec(memory_space=pltpu.MemorySpace.VMEM)] * 9
                 + [pl.BlockSpec(memory_space=pltpu.MemorySpace.SMEM)],
        out_specs=pl.BlockSpec(memory_space=pltpu.MemorySpace.VMEM),
    )(Xt, W1bdT, b1c,
      gamma1.reshape(mid, 1), beta1.reshape(mid, 1),
      W2T, b2c,
      gamma2.reshape(Cout, 1), beta2.reshape(Cout, 1),
      wlin.reshape(1, 1))
    return out.reshape(N, Cout, 1)


def ref_forward(x, params):
    """Plain-JAX reference replicating the PyTorch forward (training-mode BN)."""
    w1, b1, gamma1, beta1, w2, b2, gamma2, beta2, wlin = params
    N, Cin, L = x.shape
    mid, Cout = w1.shape[0], w2.shape[0]
    T1 = L // 4
    xw = x.reshape(N, Cin, T1, 4)
    y1 = jnp.einsum('nctk,mck->nmt', xw, w1) + b1[None, :, None]
    m1 = y1.mean(axis=(0, 2)); v1 = y1.var(axis=(0, 2))
    y1 = ((y1 - m1[None, :, None]) / jnp.sqrt(v1[None, :, None] + EPS)
          * gamma1[None, :, None] + beta1[None, :, None])
    y1 = jnp.maximum(y1, 0.0)
    T2 = T1 // 4
    yw = y1.reshape(N, mid, T2, 4)
    z = jnp.einsum('nmtj,omj->not', yw, w2) + b2[None, :, None]
    z = jnp.maximum(z, 0.0)
    m2 = z.mean(axis=(0, 2)); v2 = z.var(axis=(0, 2))
    z = ((z - m2[None, :, None]) / jnp.sqrt(v2[None, :, None] + EPS)
         * gamma2[None, :, None] + beta2[None, :, None])
    mp = jnp.max(z.reshape(N, Cout, T2 // 64, 64), axis=-1)   # MaxPool1d(64)
    return mp * wlin[0, 0]                                    # Linear(1,1,bias=False)


if __name__ == "__main__":
    key = jax.random.PRNGKey(0)
    N, Cin, mid, Cout, L = 2, 4, 8, 4, 1024   # L=1024 => 1024/4/4 = 64 => pool(64) -> 1
    ks = jax.random.split(key, 10)
    w1 = jax.random.normal(ks[0], (mid, Cin, 4), jnp.float32) * 0.3
    b1 = jax.random.normal(ks[1], (mid,), jnp.float32) * 0.1
    gamma1 = 1.0 + 0.1 * jax.random.normal(ks[2], (mid,), jnp.float32)
    beta1 = 0.1 * jax.random.normal(ks[3], (mid,), jnp.float32)
    w2 = jax.random.normal(ks[4], (Cout, mid, 4), jnp.float32) * 0.3
    b2 = jax.random.normal(ks[5], (Cout,), jnp.float32) * 0.1
    gamma2 = 1.0 + 0.1 * jax.random.normal(ks[6], (Cout,), jnp.float32)
    beta2 = 0.1 * jax.random.normal(ks[7], (Cout,), jnp.float32)
    wlin = jax.random.normal(ks[8], (1, 1), jnp.float32)
    x = jax.random.normal(ks[9], (N, Cin, L), jnp.float32)

    params = (w1, b1, gamma1, beta1, w2, b2, gamma2, beta2, wlin)

    out = fine_tune_sbp_forward(x, params)
    out = jax.block_until_ready(out)

    ref = ref_forward(x, params)
    np.testing.assert_allclose(np.asarray(out), np.asarray(ref), rtol=1e-4, atol=1e-4)
    assert out.shape == (N, Cout, 1)
    print("KERNEL_OK")
</pallas_src>

<mosaic_0001>
module attributes {stable_mosaic.version = 11 : i64} {
  func.func @_fine_tune_kernel(%arg0: memref<64x128xf32, #tpu.memory_space<vmem>>, %arg1: memref<32x64xf32, #tpu.memory_space<vmem>>, %arg2: memref<32x1xf32, #tpu.memory_space<vmem>>, %arg3: memref<8x1xf32, #tpu.memory_space<vmem>>, %arg4: memref<8x1xf32, #tpu.memory_space<vmem>>, %arg5: memref<4x32xf32, #tpu.memory_space<vmem>>, %arg6: memref<4x1xf32, #tpu.memory_space<vmem>>, %arg7: memref<4x1xf32, #tpu.memory_space<vmem>>, %arg8: memref<4x1xf32, #tpu.memory_space<vmem>>, %arg9: memref<1x1xf32, #tpu.memory_space<smem>>, %arg10: memref<2x4xf32, #tpu.memory_space<vmem>>) attributes {dimension_semantics = [], scalar_prefetch = 0 : i64, scratch_operands = 0 : i64, tpu.core_type = #tpu.core_type<tc>} {
    %c0 = arith.constant 0 : index
    %c0_0 = arith.constant 0 : index
    %0 = vector.load %arg0[%c0, %c0_0] : memref<64x128xf32, #tpu.memory_space<vmem>>, vector<64x128xf32>
    %c0_1 = arith.constant 0 : index
    %c0_2 = arith.constant 0 : index
    %1 = vector.load %arg1[%c0_1, %c0_2] : memref<32x64xf32, #tpu.memory_space<vmem>>, vector<32x64xf32>
    %cst = arith.constant dense<0.000000e+00> : vector<32x128xf32>
    %2 = tpu.matmul %1, %0, %cst {dimension_numbers = #tpu.dot_dimension_numbers<[1], [0], [0], [1], [0, 0, 1, 1], [], []>} : vector<32x64xf32>, vector<64x128xf32>, vector<32x128xf32> -> vector<32x128xf32>
    %c0_3 = arith.constant 0 : index
    %c0_4 = arith.constant 0 : index
    %3 = vector.load %arg2[%c0_3, %c0_4] : memref<32x1xf32, #tpu.memory_space<vmem>>, vector<32x1xf32>
    %4 = vector.broadcast %3 : vector<32x1xf32> to vector<32x128xf32>
    %5 = arith.addf %2, %4 : vector<32x128xf32>
    %cst_5 = arith.constant dense<0.000000e+00> : vector<32xf32>
    %6 = vector.multi_reduction <add>, %5, %cst_5 [1] : vector<32x128xf32> to vector<32xf32>
    %7 = vector.shape_cast %6 : vector<32xf32> to vector<32x1xf32>
    %8 = vector.extract_strided_slice %7 {offsets = [0, 0], sizes = [8, 1], strides = [1, 1]} : vector<32x1xf32> to vector<8x1xf32>
    %9 = vector.extract_strided_slice %7 {offsets = [8, 0], sizes = [8, 1], strides = [1, 1]} : vector<32x1xf32> to vector<8x1xf32>
    %10 = arith.addf %8, %9 : vector<8x1xf32>
    %11 = vector.extract_strided_slice %7 {offsets = [16, 0], sizes = [8, 1], strides = [1, 1]} : vector<32x1xf32> to vector<8x1xf32>
    %12 = arith.addf %10, %11 : vector<8x1xf32>
    %13 = vector.extract_strided_slice %7 {offsets = [24, 0], sizes = [8, 1], strides = [1, 1]} : vector<32x1xf32> to vector<8x1xf32>
    %14 = arith.addf %12, %13 : vector<8x1xf32>
    %cst_6 = arith.constant 5.120000e+02 : f32
    %15 = vector.broadcast %cst_6 : f32 to vector<8x1xf32>
    %16 = arith.divf %14, %15 : vector<8x1xf32>
    %17 = tpu.concatenate %16, %16, %16, %16 in 0 : vector<8x1xf32>, vector<8x1xf32>, vector<8x1xf32>, vector<8x1xf32> -> vector<32x1xf32>
    %18 = vector.broadcast %17 : vector<32x1xf32> to vector<32x128xf32>
    %19 = arith.subf %5, %18 : vector<32x128xf32>
    %20 = arith.mulf %19, %19 : vector<32x128xf32>
    %cst_7 = arith.constant dense<0.000000e+00> : vector<32xf32>
    %21 = vector.multi_reduction <add>, %20, %cst_7 [1] : vector<32x128xf32> to vector<32xf32>
    %22 = vector.shape_cast %21 : vector<32xf32> to vector<32x1xf32>
    %23 = vector.extract_strided_slice %22 {offsets = [0, 0], sizes = [8, 1], strides = [1, 1]} : vector<32x1xf32> to vector<8x1xf32>
    %24 = vector.extract_strided_slice %22 {offsets = [8, 0], sizes = [8, 1], strides = [1, 1]} : vector<32x1xf32> to vector<8x1xf32>
    %25 = arith.addf %23, %24 : vector<8x1xf32>
    %26 = vector.extract_strided_slice %22 {offsets = [16, 0], sizes = [8, 1], strides = [1, 1]} : vector<32x1xf32> to vector<8x1xf32>
    %27 = arith.addf %25, %26 : vector<8x1xf32>
    %28 = vector.extract_strided_slice %22 {offsets = [24, 0], sizes = [8, 1], strides = [1, 1]} : vector<32x1xf32> to vector<8x1xf32>
    %29 = arith.addf %27, %28 : vector<8x1xf32>
    %cst_8 = arith.constant 5.120000e+02 : f32
    %30 = vector.broadcast %cst_8 : f32 to vector<8x1xf32>
    %31 = arith.divf %29, %30 : vector<8x1xf32>
    %c0_9 = arith.constant 0 : index
    %c0_10 = arith.constant 0 : index
    %32 = vector.load %arg3[%c0_9, %c0_10] : memref<8x1xf32, #tpu.memory_space<vmem>>, vector<8x1xf32>
    %cst_11 = arith.constant 9.99999974E-6 : f32
    %33 = vector.broadcast %cst_11 : f32 to vector<8x1xf32>
    %34 = arith.addf %31, %33 : vector<8x1xf32>
    %35 = math.rsqrt %34 : vector<8x1xf32>
    %36 = arith.mulf %32, %35 : vector<8x1xf32>
    %37 = tpu.concatenate %36, %36, %36, %36 in 0 : vector<8x1xf32>, vector<8x1xf32>, vector<8x1xf32>, vector<8x1xf32> -> vector<32x1xf32>
    %c0_12 = arith.constant 0 : index
    %c0_13 = arith.constant 0 : index
    %38 = vector.load %arg4[%c0_12, %c0_13] : memref<8x1xf32, #tpu.memory_space<vmem>>, vector<8x1xf32>
    %39 = tpu.concatenate %38, %38, %38, %38 in 0 : vector<8x1xf32>, vector<8x1xf32>, vector<8x1xf32>, vector<8x1xf32> -> vector<32x1xf32>
    %40 = vector.broadcast %37 : vector<32x1xf32> to vector<32x128xf32>
    %41 = arith.mulf %19, %40 : vector<32x128xf32>
    %42 = vector.broadcast %39 : vector<32x1xf32> to vector<32x128xf32>
    %43 = arith.addf %41, %42 : vector<32x128xf32>
    %cst_14 = arith.constant 0.000000e+00 : f32
    %44 = vector.broadcast %cst_14 : f32 to vector<32x128xf32>
    %45 = arith.maximumf %43, %44 : vector<32x128xf32>
    %c0_15 = arith.constant 0 : index
    %c0_16 = arith.constant 0 : index
    %46 = vector.load %arg5[%c0_15, %c0_16] : memref<4x32xf32, #tpu.memory_space<vmem>>, vector<4x32xf32>
    %cst_17 = arith.constant dense<0.000000e+00> : vector<4x128xf32>
    %47 = tpu.matmul %46, %45, %cst_17 {dimension_numbers = #tpu.dot_dimension_numbers<[1], [0], [0], [1], [0, 0, 1, 1], [], []>} : vector<4x32xf32>, vector<32x128xf32>, vector<4x128xf32> -> vector<4x128xf32>
    %c0_18 = arith.constant 0 : index
    %c0_19 = arith.constant 0 : index
    %48 = vector.load %arg6[%c0_18, %c0_19] : memref<4x1xf32, #tpu.memory_space<vmem>>, vector<4x1xf32>
    %49 = vector.broadcast %48 : vector<4x1xf32> to vector<4x128xf32>
    %50 = arith.addf %47, %49 : vector<4x128xf32>
    %cst_20 = arith.constant 0.000000e+00 : f32
    %51 = vector.broadcast %cst_20 : f32 to vector<4x128xf32>
    %52 = arith.maximumf %50, %51 : vector<4x128xf32>
    %cst_21 = arith.constant dense<0.000000e+00> : vector<4xf32>
    %53 = vector.multi_reduction <add>, %52, %cst_21 [1] : vector<4x128xf32> to vector<4xf32>
    %54 = vector.shape_cast %53 : vector<4xf32> to vector<4x1xf32>
    %cst_22 = arith.constant 1.280000e+02 : f32
    %55 = vector.broadcast %cst_22 : f32 to vector<4x1xf32>
    %56 = arith.divf %54, %55 : vector<4x1xf32>
    %57 = vector.broadcast %56 : vector<4x1xf32> to vector<4x128xf32>
    %58 = arith.subf %52, %57 : vector<4x128xf32>
    %59 = arith.mulf %58, %58 : vector<4x128xf32>
    %cst_23 = arith.constant dense<0.000000e+00> : vector<4xf32>
    %60 = vector.multi_reduction <add>, %59, %cst_23 [1] : vector<4x128xf32> to vector<4xf32>
    %61 = vector.shape_cast %60 : vector<4xf32> to vector<4x1xf32>
    %cst_24 = arith.constant 1.280000e+02 : f32
    %62 = vector.broadcast %cst_24 : f32 to vector<4x1xf32>
    %63 = arith.divf %61, %62 : vector<4x1xf32>
    %c0_25 = arith.constant 0 : index
    %c0_26 = arith.constant 0 : index
    %64 = vector.load %arg7[%c0_25, %c0_26] : memref<4x1xf32, #tpu.memory_space<vmem>>, vector<4x1xf32>
    %cst_27 = arith.constant 9.99999974E-6 : f32
    %65 = vector.broadcast %cst_27 : f32 to vector<4x1xf32>
    %66 = arith.addf %63, %65 : vector<4x1xf32>
    %67 = math.rsqrt %66 : vector<4x1xf32>
    %68 = arith.mulf %64, %67 : vector<4x1xf32>
    %69 = vector.broadcast %68 : vector<4x1xf32> to vector<4x128xf32>
    %70 = arith.mulf %58, %69 : vector<4x128xf32>
    %c0_28 = arith.constant 0 : index
    %c0_29 = arith.constant 0 : index
    %71 = vector.load %arg8[%c0_28, %c0_29] : memref<4x1xf32, #tpu.memory_space<vmem>>, vector<4x1xf32>
    %72 = vector.broadcast %71 : vector<4x1xf32> to vector<4x128xf32>
    %73 = arith.addf %70, %72 : vector<4x128xf32>
    %74 = tpu.transpose %73, [1, 0] : vector<4x128xf32> -> vector<128x4xf32>
    %75 = vector.shape_cast %74 : vector<128x4xf32> to vector<2x64x4xf32>
    %cst_30 = arith.constant dense<0xFF800000> : vector<2x4xf32>
    %76 = vector.multi_reduction <maximumf>, %75, %cst_30 [1] : vector<2x64x4xf32> to vector<2x4xf32>
    %c0_31 = arith.constant 0 : index
    %c0_32 = arith.constant 0 : index
    %77 = memref.load %arg9[%c0_31, %c0_32] : memref<1x1xf32, #tpu.memory_space<smem>>
    %78 = vector.broadcast %77 : f32 to vector<2x4xf32>
    %79 = arith.mulf %76, %78 : vector<2x4xf32>
    %c0_33 = arith.constant 0 : index
    %c0_34 = arith.constant 0 : index
    %80 = vector.load %arg10[%c0_33, %c0_34] : memref<2x4xf32, #tpu.memory_space<vmem>>, vector<2x4xf32>
    tpu.vector_store %arg10[%c0_33, %c0_34], %79 {strides = array<i32>} : memref<2x4xf32, #tpu.memory_space<vmem>>, vector<2x4xf32>,
    return
  }
}

</mosaic_0001>

<llo_original>
// kernel: tpu_custom_call.1
$region0: #{tpu_custom_call.1}
  #allocation0 [shape = 'u32[]', space=smem, size = 0x4, offset = 0x4, fixed_abs, tag = 'smem constant byte address 0x4 - core index']
  #allocation1 [shape = 'u32[144,128]{1,0:T(1,128)}', space=vmem, size = 0x12000, scoped, tag = 'internal scratch']
  #allocation2 [shape = 'f32[1,1]{1,0:T(1,128)S(6)}', space=smem, size = 0x200, scoped, tag = 'scoped memory for tpu_custom_call.1']
  %s0 = inlined_call_operand.vmem [shape: f32[64,128], index: 0, kind: input, shape index: {}]
  %s1 = inlined_call_operand.hbm [shape: f32[32,64], index: 1, kind: input, shape index: {}]
  %s2 = inlined_call_operand.vmem [shape: f32[32,1], index: 2, kind: input, shape index: {}]
  %s3 = inlined_call_operand.vmem [shape: f32[8,1], index: 3, kind: input, shape index: {}]
  %s4 = inlined_call_operand.vmem [shape: f32[8,1], index: 4, kind: input, shape index: {}]
  %s5 = inlined_call_operand.vmem [shape: f32[4,32], index: 5, kind: input, shape index: {}]
  %s6 = inlined_call_operand.vmem [shape: f32[4,1], index: 6, kind: input, shape index: {}]
  %s7 = inlined_call_operand.vmem [shape: f32[4,1], index: 7, kind: input, shape index: {}]
  %s8 = inlined_call_operand.vmem [shape: f32[4,1], index: 8, kind: input, shape index: {}]
  %s9 = inlined_call_operand.<no memory space> [shape: f32[1,1], index: 9, kind: input, shape index: {}]
  %s10 = inlined_call_operand.hbm [shape: f32[2,4], index: 10, kind: output, shape index: {}]
  %s11 = sld [smem:[#allocation0]]
  $region54: #{tpu_custom_call.1} parent=0
    _
  %s13 = ssub.s32 1, %s11
  %s14 = scalar_select 0, %s13, %s11
  %15 = sst [smem:[#allocation2]] %s9
  $region1: #{tpu_custom_call.1} parent=0
    #allocation3 [shape = 'u8[16384]{0}', space=vmem, size = 0x4000, scoped, tag = 'input window, operand 1, single buffered']
    #allocation4 [shape = 's32[1]{0}', space=sflag, size = 0x4, scoped, tag = 'scoped memory for tpu_custom_call.1']
    #allocation5 [shape = 's32[1]{0}', space=sflag, size = 0x4, scoped, tag = 'scoped memory for tpu_custom_call.1']
    #allocation6 [shape = 'u8[1024]{0}', space=vmem, size = 0x400, scoped, tag = 'output window, operand 0, single buffered']
    %16 = vsyncpa [#allocation4], 0
    %17 = vsyncpa [#allocation5], 0
    // Predicated region
    $region2: #{tpu_custom_call.1} parent=1 // pred_check
      _
    $region3: #{tpu_custom_call.1} parent=1 // pred_check_branch
      %19 = sbr.rel (0) target = $region5
    $region4: #{tpu_custom_call.1} parent=1 // pred_region
      _
    $region5: #{tpu_custom_call.1} parent=1 // pred_fallthru
      _
    // Predicated region
    $region6: #{tpu_custom_call.1} parent=1 // pred_check
      _
    $region7: #{tpu_custom_call.1} parent=1 // pred_check_branch
      %21 = sbr.rel (0) target = $region9
    $region8: #{tpu_custom_call.1} parent=1 // pred_region
      %s23 = ssub.s32 512, 512
      %24 = vsyncadd [#allocation4], %s23
      %s25 = sshll.u32 [#allocation3], 4
      %s26 = int_to_ptr.vmem [resolvable:$true] %s25
      %31 = dma.hbm_to_vmem [thread:$0]  %s1, 512, %s26, [#allocation4], 128, 128, 8
    $region9: #{tpu_custom_call.1} parent=1 // pred_fallthru
      _
    // Predicated region
    $region10: #{tpu_custom_call.1} parent=1 // pred_check
      _
    $region11: #{tpu_custom_call.1} parent=1 // pred_check_branch
      %33 = sbr.rel (0) target = $region13
    $region12: #{tpu_custom_call.1} parent=1 // pred_region
      _
    $region13: #{tpu_custom_call.1} parent=1 // pred_fallthru
      _
    // Predicated region
    $region14: #{tpu_custom_call.1} parent=1 // pred_check
      _
    $region15: #{tpu_custom_call.1} parent=1 // pred_check_branch
      %35 = sbr.rel (0) target = $region17
    $region16: #{tpu_custom_call.1} parent=1 // pred_region
      _
    $region17: #{tpu_custom_call.1} parent=1 // pred_fallthru
      _
    // Predicated region
    $region18: #{tpu_custom_call.1} parent=1 // pred_check
      _
    $region19: #{tpu_custom_call.1} parent=1 // pred_check_branch
      %37 = sbr.rel (0) target = $region21
    $region20: #{tpu_custom_call.1} parent=1 // pred_region
      _
    $region21: #{tpu_custom_call.1} parent=1 // pred_fallthru
      _
    // Predicated region
    $region22: #{tpu_custom_call.1} parent=1 // pred_check
      _
    $region23: #{tpu_custom_call.1} parent=1 // pred_check_branch
      %39 = sbr.rel (0) target = $region25
    $region24: #{tpu_custom_call.1} parent=1 // pred_region
      _
    $region25: #{tpu_custom_call.1} parent=1 // pred_fallthru
      _
    // Predicated region
    $region26: #{tpu_custom_call.1} parent=1 // pred_check
      _
    $region27: #{tpu_custom_call.1} parent=1 // pred_check_branch
      %41 = sbr.rel (0) target = $region29
    $region28: #{tpu_custom_call.1} parent=1 // pred_region
      _
    $region29: #{tpu_custom_call.1} parent=1 // pred_fallthru
      _
    // Predicated region
    $region30: #{tpu_custom_call.1} parent=1 // pred_check
      _
    $region31: #{tpu_custom_call.1} parent=1 // pred_check_branch
      %43 = sbr.rel (0) target = $region33
    $region32: #{tpu_custom_call.1} parent=1 // pred_region
      _
    $region33: #{tpu_custom_call.1} parent=1 // pred_fallthru
      _
    // Predicated region
    $region34: #{tpu_custom_call.1} parent=1 // pred_check
      _
    $region35: #{tpu_custom_call.1} parent=1 // pred_check_branch
      %45 = sbr.rel (0) target = $region37
    $region36: #{tpu_custom_call.1} parent=1 // pred_region
      _
    $region37: #{tpu_custom_call.1} parent=1 // pred_fallthru
      _
    // Predicated region
    $region38: #{tpu_custom_call.1} parent=1 // pred_check
      _
    $region39: #{tpu_custom_call.1} parent=1 // pred_check_branch
      %47 = sbr.rel (0) target = $region41
    $region40: #{tpu_custom_call.1} parent=1 // pred_region
      _
    $region41: #{tpu_custom_call.1} parent=1 // pred_fallthru
      _
    // Predicated region
    $region42: #{tpu_custom_call.1} parent=1 // pred_check
      _
    $region43: #{tpu_custom_call.1} parent=1 // pred_check_branch
      %49 = sbr.rel (0) target = $region45
    $region44: #{tpu_custom_call.1} parent=1 // pred_region
      %50 = dma.done [#allocation4], 512
    $region45: #{tpu_custom_call.1} parent=1 // pred_fallthru
      _
    %v51 = vld [vmem:[%s0] sm:$0xff]
    %v52 = vld [vmem:[%s0 + $0x8] sm:$0xff]
    %v53 = vld [vmem:[%s0 + $0x10] sm:$0xff]
    %v54 = vld [vmem:[%s0 + $0x18] sm:$0xff]
    %v55 = vld [vmem:[%s0 + $0x20] sm:$0xff]
    %v56 = vld [vmem:[%s0 + $0x28] sm:$0xff]
    %v57 = vld [vmem:[%s0 + $0x30] sm:$0xff]
    %v58 = vld [vmem:[%s0 + $0x38] sm:$0xff]
    %v59 = vld [vmem:[#allocation3] sm:$0xff]
    %v60 = vld [vmem:[#allocation3 + $0x8] sm:$0xff]
    %v61 = vld [vmem:[#allocation3 + $0x10] sm:$0xff]
    %v62 = vld [vmem:[#allocation3 + $0x18] sm:$0xff]
    %v63 = vld [vmem:[%s2] sm:$0xff]
    %v64 = vld [vmem:[%s2 + $0x8] sm:$0xff]
    %v65 = vld [vmem:[%s2 + $0x10] sm:$0xff]
    %v66 = vld [vmem:[%s2 + $0x18] sm:$0xff]
    %68 = vset.pattern.permute.xlu0 0
    %69 = vperm.xlu0 %68, %v63
    %v70 = vpop.permute.xlu0 %69
    %73 = vset.pattern.permute.xlu0 0
    %74 = vperm.xlu0 %73, %v64
    %v75 = vpop.permute.xlu0 %74
    %78 = vset.pattern.permute.xlu0 0
    %79 = vperm.xlu0 %78, %v65
    %v80 = vpop.permute.xlu0 %79
    %83 = vset.pattern.permute.xlu0 0
    %84 = vperm.xlu0 %83, %v66
    %v85 = vpop.permute.xlu0 %84
    %vm87 = vcmask 523264
    %v89 = vsel %vm87, %v59, 0
    %v92 = vsel %vm87, %v60, 0
    %v95 = vsel %vm87, %v61, 0
    %v98 = vsel %vm87, %v62, 0
    %100 = vmatprep.subr.mxu0 0.0
    %101 = vmatpush1.msra.mxu0 %v51
    %102 = vmatprep.subr.mxu0 0.0
    %103 = vmatpush1.msra.mxu0 %v52
    %104 = vmatprep.subr.mxu0 0.0
    %105 = vmatpush1.msra.mxu0 %v53
    %106 = vmatprep.subr.mxu0 0.0
    %107 = vmatpush1.msra.mxu0 %v54
    %108 = vmatprep.subr.mxu0 0.0
    %109 = vmatpush1.msra.mxu0 %v55
    %110 = vmatprep.subr.mxu0 0.0
    %111 = vmatpush1.msra.mxu0 %v56
    %112 = vmatprep.subr.mxu0 0.0
    %113 = vmatpush1.msra.mxu0 %v57
    %114 = vmatprep.subr.mxu0 0.0
    %115 = vmatpush1.msra.mxu0 %v58
    %116 = vmatprep.subr.mxu0 0.0
    %117 = vmatpush1.msra.mxu0 0.0
    %118 = vmatprep.subr.mxu0 0.0
    %119 = vmatpush1.msra.mxu0 0.0
    %120 = vmatprep.subr.mxu0 0.0
    %121 = vmatpush1.msra.mxu0 0.0
    %122 = vmatprep.subr.mxu0 0.0
    %123 = vmatpush1.msra.mxu0 0.0
    %124 = vmatprep.subr.mxu0 0.0
    %125 = vmatpush1.msra.mxu0 0.0
    %126 = vmatprep.subr.mxu0 0.0
    %127 = vmatpush1.msra.mxu0 0.0
    %128 = vmatprep.subr.mxu0 0.0
    %129 = vmatpush1.msra.mxu0 0.0
    %130 = vmatprep.subr.mxu0 0.0
    %131 = vmatpush1.msra.mxu0 0.0
    %132 = vmatprep.subr.mxu0 0.0
    %133 = vmatpush1.msra.mxu0 0.0
    %134 = vmatprep.subr.mxu0 0.0
    %135 = vmatpush1.msra.mxu0 0.0
    %136 = vmatprep.subr.mxu0 0.0
    %137 = vmatpush1.msra.mxu0 0.0
    %138 = vmatprep.subr.mxu0 0.0
    %139 = vmatpush1.msra.mxu0 0.0
    %140 = vmatprep.subr.mxu0 0.0
    %141 = vmatpush1.msra.mxu0 0.0
    %142 = vmatprep.subr.mxu0 0.0
    %143 = vmatpush1.msra.mxu0 0.0
    %144 = vmatprep.subr.mxu0 0.0
    %145 = vmatpush1.msra.mxu0 0.0
    %146 = vmatprep.subr.mxu0 0.0
    %147 = vmatpush1.msra.mxu0 0.0
    %148 = vmatprep.subr.mxu0 0.0
    %149 = vmatpush1.msra.mxu0 0.0
    %150 = vmatprep.subr.mxu0 0.0
    %151 = vmatpush1.msra.mxu0 0.0
    %152 = vmatprep.subr.mxu0 0.0
    %153 = vmatpush1.msra.mxu0 0.0
    %154 = vmatprep.subr.mxu0 0.0
    %155 = vmatpush1.msra.mxu0 0.0
    %156 = vmatprep.subr.mxu0 0.0
    %157 = vmatpush1.msra.mxu0 0.0
    %158 = vmatprep.subr.mxu0 0.0
    %159 = vmatpush1.msra.mxu0 0.0
    %160 = vmatprep.subr.mxu0 0.0
    %161 = vmatpush1.msra.mxu0 0.0
    %162 = vmatprep.subr.mxu0 0.0
    %163 = vmatpush1.msra.mxu0 0.0
    %164 = vmatprep.mubr.f32.mxu0 0.0
    %165 = vmatmul.mubr.f32.gmra.mrb[0].mxu0 %v89
    %v166 = vpop.f32.mrb[0].mxu0
    %v167 = vadd.f32 %v70, %v166
    %v168 = vpop.f32.mrb[0].mxu0
    %169 = vmatprep.mubr.f32.mxu0 0.0
    %170 = vmatmul.mubr.f32.gmra.mrb[0].mxu0 %v92
    %v171 = vpop.f32.mrb[0].mxu0
    %v172 = vadd.f32 %v75, %v171
    %v173 = vpop.f32.mrb[0].mxu0
    %174 = vmatprep.mubr.f32.mxu0 0.0
    %175 = vmatmul.mubr.f32.gmra.mrb[0].mxu0 %v95
    %v176 = vpop.f32.mrb[0].mxu0
    %v177 = vadd.f32 %v80, %v176
    %v178 = vpop.f32.mrb[0].mxu0
    %179 = vmatprep.mubr.f32.mxu0 0.0
    %180 = vmatmul.mubr.f32.gmra.mrb[0].mxu0 %v98
    %v181 = vpop.f32.mrb[0].mxu0
    %v182 = vadd.f32 %v85, %v181
    %v183 = vpop.f32.mrb[0].mxu0
    %184 = vdwg.mxu0
    %185 = vadd.xlane.f32.xlu0 %v167
    %v186 = vpop.xlane.xlu0 %185
    %187 = vadd.xlane.f32.xlu0 %v172
    %v188 = vpop.xlane.xlu0 %187
    %189 = vadd.xlane.f32.xlu0 %v177
    %v190 = vpop.xlane.xlu0 %189
    %191 = vadd.xlane.f32.xlu0 %v182
    %v192 = vpop.xlane.xlu0 %191
    %v193 = vadd.f32 %v186, %v188
    %v194 = vadd.f32 %v193, %v190
    %v195 = vadd.f32 %v194, %v192
    %v196 = vrcp.pop 512.0
    %v197 = vmul.f32 %v195, %v196
    %199 = vset.pattern.permute.xlu0 0
    %200 = vperm.xlu0 %199, %v197
    %v201 = vpop.permute.xlu0 %200
    %v203 = vsub.f32 %v167, %v201
    %v204 = vsub.f32 %v172, %v201
    %v205 = vsub.f32 %v177, %v201
    %v206 = vsub.f32 %v182, %v201
    %v207 = vmul.f32 %v203, %v203
    %v208 = vmul.f32 %v204, %v204
    %v209 = vmul.f32 %v205, %v205
    %v210 = vmul.f32 %v206, %v206
    %211 = vadd.xlane.f32.xlu0 %v207
    %v212 = vpop.xlane.xlu0 %211
    %213 = vadd.xlane.f32.xlu0 %v208
    %v214 = vpop.xlane.xlu0 %213
    %215 = vadd.xlane.f32.xlu0 %v209
    %v216 = vpop.xlane.xlu0 %215
    %217 = vadd.xlane.f32.xlu0 %v210
    %v218 = vpop.xlane.xlu0 %217
    %v219 = vadd.f32 %v212, %v214
    %v220 = vadd.f32 %v219, %v216
    %v221 = vadd.f32 %v220, %v218
    %v222 = vmul.f32 %v221, %v196
    %v223 = vld [vmem:[%s3] sm:$0xff]
    %v224 = vadd.f32 %v222, 1e-05
    %v225 = vrsqrt.pop %v224
    %v226 = vmul.f32 %v223, %v225
    %v227 = vld [vmem:[%s4] sm:$0xff]
    %229 = vset.pattern.permute.xlu0 0
    %230 = vperm.xlu0 %229, %v226
    %v231 = vpop.permute.xlu0 %230
    %v233 = vmul.f32 %v203, %v231
    %v234 = vmul.f32 %v204, %v231
    %v235 = vmul.f32 %v205, %v231
    %v236 = vmul.f32 %v206, %v231
    %238 = vset.pattern.permute.xlu0 0
    %239 = vperm.xlu0 %238, %v227
    %v240 = vpop.permute.xlu0 %239
    %v242 = vadd.f32 %v233, %v240
    %v243 = vadd.f32 %v234, %v240
    %v244 = vadd.f32 %v235, %v240
    %v245 = vadd.f32 %v236, %v240
    %v246 = vmax.f32 %v242, 0.0
    %v247 = vmax.f32 %v243, 0.0
    %v248 = vmax.f32 %v244, 0.0
    %v249 = vmax.f32 %v245, 0.0
    %v250 = vld [vmem:[%s5] sm:$0xf]
    %v251 = vld [vmem:[%s6] sm:$0xf]
    %253 = vset.pattern.permute.xlu0 0
    %254 = vperm.xlu0 %253, %v251
    %v255 = vpop.permute.xlu0 %254
    %vm257 = vcmask 261120
    %v259 = vsel %vm257, %v250, 0
    %261 = vmatprep.subr.mxu0 0.0
    %262 = vmatpush1.msra.mxu0 %v246
    %263 = vmatprep.subr.mxu0 0.0
    %264 = vmatpush1.msra.mxu0 %v247
    %265 = vmatprep.subr.mxu0 0.0
    %266 = vmatpush1.msra.mxu0 %v248
    %267 = vmatprep.subr.mxu0 0.0
    %268 = vmatpush1.msra.mxu0 %v249
    %269 = vmatprep.subr.mxu0 0.0
    %270 = vmatpush1.msra.mxu0 0.0
    %271 = vmatprep.subr.mxu0 0.0
    %272 = vmatpush1.msra.mxu0 0.0
    %273 = vmatprep.subr.mxu0 0.0
    %274 = vmatpush1.msra.mxu0 0.0
    %275 = vmatprep.subr.mxu0 0.0
    %276 = vmatpush1.msra.mxu0 0.0
    %277 = vmatprep.subr.mxu0 0.0
    %278 = vmatpush1.msra.mxu0 0.0
    %279 = vmatprep.subr.mxu0 0.0
    %280 = vmatpush1.msra.mxu0 0.0
    %281 = vmatprep.subr.mxu0 0.0
    %282 = vmatpush1.msra.mxu0 0.0
    %283 = vmatprep.subr.mxu0 0.0
    %284 = vmatpush1.msra.mxu0 0.0
    %285 = vmatprep.subr.mxu0 0.0
    %286 = vmatpush1.msra.mxu0 0.0
    %287 = vmatprep.subr.mxu0 0.0
    %288 = vmatpush1.msra.mxu0 0.0
    %289 = vmatprep.subr.mxu0 0.0
    %290 = vmatpush1.msra.mxu0 0.0
    %291 = vmatprep.subr.mxu0 0.0
    %292 = vmatpush1.msra.mxu0 0.0
    %293 = vmatprep.subr.mxu0 0.0
    %294 = vmatpush1.msra.mxu0 0.0
    %295 = vmatprep.subr.mxu0 0.0
    %296 = vmatpush1.msra.mxu0 0.0
    %297 = vmatprep.subr.mxu0 0.0
    %298 = vmatpush1.msra.mxu0 0.0
    %299 = vmatprep.subr.mxu0 0.0
    %300 = vmatpush1.msra.mxu0 0.0
    %301 = vmatprep.subr.mxu0 0.0
    %302 = vmatpush1.msra.mxu0 0.0
    %303 = vmatprep.subr.mxu0 0.0
    %304 = vmatpush1.msra.mxu0 0.0
    %305 = vmatprep.subr.mxu0 0.0
    %306 = vmatpush1.msra.mxu0 0.0
    %307 = vmatprep.subr.mxu0 0.0
    %308 = vmatpush1.msra.mxu0 0.0
    %309 = vmatprep.subr.mxu0 0.0
    %310 = vmatpush1.msra.mxu0 0.0
    %311 = vmatprep.subr.mxu0 0.0
    %312 = vmatpush1.msra.mxu0 0.0
    %313 = vmatprep.subr.mxu0 0.0
    %314 = vmatpush1.msra.mxu0 0.0
    %315 = vmatprep.subr.mxu0 0.0
    %316 = vmatpush1.msra.mxu0 0.0
    %317 = vmatprep.subr.mxu0 0.0
    %318 = vmatpush1.msra.mxu0 0.0
    %319 = vmatprep.subr.mxu0 0.0
    %320 = vmatpush1.msra.mxu0 0.0
    %321 = vmatprep.subr.mxu0 0.0
    %322 = vmatpush1.msra.mxu0 0.0
    %323 = vmatprep.subr.mxu0 0.0
    %324 = vmatpush1.msra.mxu0 0.0
    %325 = vmatprep.mubr.f32.mxu0 0.0
    %326 = vmatmul.mubr.f32.gmra.mrb[0].mxu0 %v259
    %v327 = vpop.f32.mrb[0].mxu0
    %v328 = vadd.f32 %v255, %v327
    %v329 = vpop.f32.mrb[0].mxu0
    %330 = vdwg.mxu0
    %v331 = vmax.f32 %v328, 0.0
    %vm332 = vcmask 1043456
    %v333 = vsel %vm332, %v331, 0.0
    %334 = vadd.xlane.f32.xlu0 %v333
    %v335 = vpop.xlane.xlu0 %334
    %v336 = vrcp.pop 128.0
    %v337 = vmul.f32 %v335, %v336
    %v338 = vsub.f32 %v331, %v337
    %v339 = vmul.f32 %v338, %v338
    %v340 = vsel %vm332, %v339, 0.0
    %341 = vadd.xlane.f32.xlu0 %v340
    %v342 = vpop.xlane.xlu0 %341
    %v343 = vmul.f32 %v342, %v336
    %v344 = vld [vmem:[%s7] sm:$0xf]
    %v345 = vadd.f32 %v343, 1e-05
    %v346 = vrsqrt.pop %v345
    %v347 = vmul.f32 %v344, %v346
    %349 = vset.pattern.permute.xlu0 0
    %350 = vperm.xlu0 %349, %v347
    %v351 = vpop.permute.xlu0 %350
    %v353 = vmul.f32 %v338, %v351
    %v354 = vld [vmem:[%s8] sm:$0xf]
    %356 = vset.pattern.permute.xlu0 0
    %357 = vperm.xlu0 %356, %v354
    %v358 = vpop.permute.xlu0 %357
    %v360 = vadd.f32 %v353, %v358
    %361 = vxpose.xlu0.b32.start [1/16] %v360, 128
    %362 = vxpose.xlu0.b32.cont [2/16] 0.0, 128
    %363 = vxpose.xlu0.b32.cont [3/16] 0.0, 128
    %364 = vxpose.xlu0.b32.cont [4/16] 0.0, 128
    %365 = vxpose.xlu0.b32.cont [5/16] 0.0, 128
    %366 = vxpose.xlu0.b32.cont [6/16] 0.0, 128
    %367 = vxpose.xlu0.b32.cont [7/16] 0.0, 128
    %368 = vxpose.xlu0.b32.cont [8/16] 0.0, 128
    %369 = vxpose.xlu0.b32.cont [9/16] 0.0, 128
    %370 = vxpose.xlu0.b32.cont [10/16] 0.0, 128
    %371 = vxpose.xlu0.b32.cont [11/16] 0.0, 128
    %372 = vxpose.xlu0.b32.cont [12/16] 0.0, 128
    %373 = vxpose.xlu0.b32.cont [13/16] 0.0, 128
    %374 = vxpose.xlu0.b32.cont [14/16] 0.0, 128
    %375 = vxpose.xlu0.b32.cont [15/16] 0.0, 128
    %376 = vxpose.xlu0.b32.end [16/16] 0.0, 128
    %v377 = vpop.trf.xlu0
    %v378 = vpop.trf.xlu0
    %v379 = vpop.trf.xlu0
    %v380 = vpop.trf.xlu0
    %v381 = vpop.trf.xlu0
    %v382 = vpop.trf.xlu0
    %v383 = vpop.trf.xlu0
    %v384 = vpop.trf.xlu0
    %v385 = vpop.trf.xlu0
    %v386 = vpop.trf.xlu0
    %v387 = vpop.trf.xlu0
    %v388 = vpop.trf.xlu0
    %v389 = vpop.trf.xlu0
    %v390 = vpop.trf.xlu0
    %v391 = vpop.trf.xlu0
    %v392 = vpop.trf.xlu0
    %vm393 = vcmask 31744
    %v394 = vsel %vm393, %v377, -inf
    %v395 = vsel %vm393, %v378, -inf
    %v396 = vsel %vm393, %v379, -inf
    %v397 = vmax.f32 %v394, %v396
    %v398 = vsel %vm393, %v380, -inf
    %v399 = vmax.f32 %v395, %v398
    %v400 = vsel %vm393, %v381, -inf
    %v401 = vmax.f32 %v397, %v400
    %v402 = vsel %vm393, %v382, -inf
    %v403 = vmax.f32 %v399, %v402
    %v404 = vsel %vm393, %v383, -inf
    %v405 = vmax.f32 %v401, %v404
    %v406 = vsel %vm393, %v384, -inf
    %v407 = vmax.f32 %v403, %v406
    %v408 = vmax.f32 %v405, %v407
    %v409 = vrot.slane %v408, 4
    %v410 = vmax.f32 %v408, %v409
    %v411 = vrot.slane %v410, 2
    %v412 = vmax.f32 %v410, %v411
    %v413 = vrot.slane %v412, 1
    %v414 = vmax.f32 %v412, %v413
    %v415 = vsel %vm393, %v385, -inf
    %v416 = vsel %vm393, %v386, -inf
    %v417 = vsel %vm393, %v387, -inf
    %v418 = vmax.f32 %v415, %v417
    %v419 = vsel %vm393, %v388, -inf
    %v420 = vmax.f32 %v416, %v419
    %v421 = vsel %vm393, %v389, -inf
    %v422 = vmax.f32 %v418, %v421
    %v423 = vsel %vm393, %v390, -inf
    %v424 = vmax.f32 %v420, %v423
    %v425 = vsel %vm393, %v391, -inf
    %v426 = vmax.f32 %v422, %v425
    %v427 = vsel %vm393, %v392, -inf
    %v428 = vmax.f32 %v424, %v427
    %v429 = vmax.f32 %v426, %v428
    %v430 = vrot.slane %v429, 4
    %v431 = vmax.f32 %v429, %v430
    %v432 = vrot.slane %v431, 2
    %v433 = vmax.f32 %v431, %v432
    %v434 = vrot.slane %v433, 1
    %v435 = vmax.f32 %v433, %v434
    %s436 = sld [smem:[#allocation2]]
    %v437 = vstv %s436
    %v438 = vmul.f32 %v414, %v437
    %v439 = vmul.f32 %v435, %v437
    %vm442 = vcmask 1041409
    %v443 = vsel %vm442, %v439, %v438
    %vm445 = vcmask 25600
    %446 = vst.msk [vmem:[#allocation6] sm:$0x3] %vm445, %v443
    // Predicated region
    $region46: #{tpu_custom_call.1} parent=1 // pred_check
      _
    $region47: #{tpu_custom_call.1} parent=1 // pred_check_branch
      %448 = sbr.rel (0) target = $region49
    $region48: #{tpu_custom_call.1} parent=1 // pred_region
      %s450 = ssub.s32 32, 32
      %451 = vsyncadd [#allocation5], %s450
      %s453 = sshll.u32 [#allocation6], 4
      %s454 = int_to_ptr.vmem [resolvable:$true] %s453
      %456 = dma.vmem_to_hbm [thread:$0]  %s454, 32, %s10, [#allocation5]
    $region49: #{tpu_custom_call.1} parent=1 // pred_fallthru
      _
    // Predicated region
    $region50: #{tpu_custom_call.1} parent=1 // pred_check
      _
    $region51: #{tpu_custom_call.1} parent=1 // pred_check_branch
      %458 = sbr.rel (0) target = $region53
    $region52: #{tpu_custom_call.1} parent=1 // pred_region
      %459 = dma.done [#allocation5], 32
    $region53: #{tpu_custom_call.1} parent=1 // pred_fallthru
      _
    %460 = vsyncpa [#allocation4], 1
    %461 = vsyncpa [#allocation5], 1

</llo_original>
